<compile_context>
chip_gen: v7x
topology: tpu7x:2x2x1
jax: 0.10.0
libtpu: 0.0.40
codegen_flags: <defaults>
</compile_context>

<pallas_src>
import functools

import jax
import jax.numpy as jnp
from jax.experimental import pallas as pl
from jax.experimental.pallas import tpu as pltpu


# --------------------------------------------------------------------------- #
# Kernels
# --------------------------------------------------------------------------- #
def _scse_fused_kernel(u_ref, wsq_ref, wexc_ref, wsp_ref, o_ref, *, inv_hw):
    """Single-pass scSE for one batch: u_ref/o_ref are (C, HW) slabs.

    u_ref:    (C, HW)    channels on sublanes, spatial on lanes
    wsq_ref:  (C//2, C)  Conv_Squeeze weight (f32)
    wexc_ref: (C, C//2)  Conv_Excitation weight (f32)
    wsp_ref:  (1, C)     sSE Conv weight (f32)
    """
    u = u_ref[...]
    u_f32 = u.astype(jnp.float32)

    # cSE: global average pool (f32 accumulation) + squeeze + excite + sigmoid.
    z = jnp.sum(u_f32, axis=1, keepdims=True) * inv_hw                 # (C, 1)
    s = jnp.dot(wsq_ref[...], z, preferred_element_type=jnp.float32)   # (C//2, 1)
    e = jnp.dot(wexc_ref[...], s, preferred_element_type=jnp.float32)  # (C, 1)
    scale_c = jax.nn.sigmoid(e)                                        # (C, 1)

    # sSE: 1x1 conv C->1 over channels (MXU) + sigmoid.
    q = jnp.dot(wsp_ref[...], u_f32, preferred_element_type=jnp.float32)  # (1, HW)
    scale_s = jax.nn.sigmoid(q)

    # Fused combine: U*scale_c + U*scale_s == U * (scale_c + scale_s).
    o_ref[...] = (u_f32 * (scale_c + scale_s)).astype(o_ref.dtype)


def _scse_apply_kernel(u_ref, wsp_ref, sc_ref, o_ref):
    """Tiled fallback: cSE scale precomputed; sSE + fused combine in-kernel.

    u_ref:  (C, T_HW)   input tile
    wsp_ref:(1, C)      sSE 1x1 conv weight (f32)
    sc_ref: (C, 1)      precomputed cSE channel scale (sigmoid of excite), f32
    o_ref:  (C, T_HW)
    """
    u = u_ref[...]
    q = jnp.dot(wsp_ref[...], u.astype(jnp.float32),
                preferred_element_type=jnp.float32)                    # (1, T_HW)
    scale_s = jax.nn.sigmoid(q)
    o_ref[...] = (u.astype(jnp.float32) * (sc_ref[...] + scale_s)).astype(o_ref.dtype)


# --------------------------------------------------------------------------- #
# Tiling helpers
# --------------------------------------------------------------------------- #
def _pick_hw_tile(hw, c_pad, itemsize, max_block_bytes):
    """Largest lane-dense (multiple-of-128) spatial tile under the VMEM budget.

    Budget uses the sublane-padded channel count (real VMEM footprint).
    Returns `hw` itself (full-extent block, always legal) when it fits.
    """
    bytes_per_lane = c_pad * itemsize
    cap = max(128, (max_block_bytes // bytes_per_lane) // 128 * 128)
    if hw <= cap:
        return hw
    # Prefer a multiple of 128 that divides HW exactly (no ragged tail).
    for t in range(cap, 127, -128):
        if hw % t == 0:
            return t
    # No clean divisor: ragged last block via cdiv grid (elementwise op, OOB
    # writes are dropped, OOB reads only feed dropped outputs).
    return cap


# --------------------------------------------------------------------------- #
# Wrapper
# --------------------------------------------------------------------------- #
def scse_pallas(u_nchw, w_squeeze, w_excite, w_spatial, *,
                force_tiled=False,
                fused_slab_bytes=4 << 20,    # per-batch (C_pad, HW_pad) slab budget
                tiled_block_bytes=4 << 20,   # per-step block budget (tiled path)
                vmem_limit_bytes=48 << 20):  # within v7x's 64 MiB physical VMEM
    """scSELayer forward.

    u_nchw:    (N, C, H, W)  (PyTorch NCHW convention), f32 or bf16
    w_squeeze: (C//2, C)  -- Conv_Squeeze.weight[:, :, 0, 0]
    w_excite:  (C, C//2)  -- Conv_Excitation.weight[:, :, 0, 0]
    w_spatial: (1, C)     -- sSE Conv.weight[:, :, 0, 0]
    """
    n, c, h, w = u_nchw.shape
    hw = h * w
    u = u_nchw.reshape(n, c, hw)            # free reshape: no transpose, no extra HBM pass

    itemsize = u.dtype.itemsize
    sub = max(8, 32 // itemsize)             # sublane pack: f32->8, bf16->16, int8->32
    c_pad = -(-c // sub) * sub
    hw_pad = -(-hw // 128) * 128
    slab_bytes = c_pad * hw_pad * itemsize   # real per-batch VMEM slab footprint

    w_sq = w_squeeze.astype(jnp.float32)
    w_ex = w_excite.astype(jnp.float32)
    w_sp = w_spatial.astype(jnp.float32)

    # ---------------- Fused single-pass path (2 HBM passes) ----------------- #
    if (not force_tiled) and slab_bytes <= fused_slab_bytes:
        kernel = functools.partial(_scse_fused_kernel, inv_hw=1.0 / hw)
        out = pl.pallas_call(
            kernel,
            out_shape=jax.ShapeDtypeStruct((n, c, hw), u.dtype),
            grid_spec=pltpu.PrefetchScalarGridSpec(
                num_scalar_prefetch=0,
                grid=(n,),
                in_specs=[
                    pl.BlockSpec((pl.Squeezed(), c, hw), lambda i: (i, 0, 0)),
                    pl.BlockSpec((c // 2, c), lambda i: (0, 0)),
                    pl.BlockSpec((c, c // 2), lambda i: (0, 0)),
                    pl.BlockSpec((1, c), lambda i: (0, 0)),
                ],
                out_specs=pl.BlockSpec((pl.Squeezed(), c, hw), lambda i: (i, 0, 0)),
            ),
            compiler_params=pltpu.CompilerParams(
                dimension_semantics=("parallel",),
                vmem_limit_bytes=vmem_limit_bytes),
        )(u, w_sq, w_ex, w_sp)
        return out.reshape(n, c, h, w)

    # ---------------- Tiled fallback (3 HBM passes) ------------------------- #
    # cSE channel scale: tiny (N, C) work with a full-spatial dependency; the mean
    # is accumulated in f32 even for bf16 inputs.
    z = jnp.mean(u.astype(jnp.float32), axis=2)           # (N, C)     AdaptiveAvgPool2d(1)
    s = z @ w_sq.T                                         # (N, C//2)  Conv_Squeeze
    e = s @ w_ex.T                                         # (N, C)     Conv_Excitation
    scale_c = jax.nn.sigmoid(e)[..., None]                 # (N, C, 1)  f32

    t_hw = _pick_hw_tile(hw, c_pad, itemsize, tiled_block_bytes)
    # Keep enough grid steps to feed both v7x TCs and overlap DMA with compute.
    while t_hw > 128 and (t_hw % 256 == 0) and n * pl.cdiv(hw, t_hw) < 8:
        t_hw //= 2
    grid = (n, pl.cdiv(hw, t_hw))

    out = pl.pallas_call(
        _scse_apply_kernel,
        out_shape=jax.ShapeDtypeStruct((n, c, hw), u.dtype),
        grid_spec=pltpu.PrefetchScalarGridSpec(
            num_scalar_prefetch=0,
            grid=grid,
            in_specs=[
                pl.BlockSpec((pl.Squeezed(), c, t_hw), lambda i, j: (i, 0, j)),
                pl.BlockSpec((1, c), lambda i, j: (0, 0)),
                pl.BlockSpec((pl.Squeezed(), c, 1), lambda i, j: (i, 0, 0)),
            ],
            out_specs=pl.BlockSpec((pl.Squeezed(), c, t_hw), lambda i, j: (i, 0, j)),
        ),
        compiler_params=pltpu.CompilerParams(
            dimension_semantics=("parallel", "parallel"),
            vmem_limit_bytes=vmem_limit_bytes),
    )(u, w_sp, scale_c)

    return out.reshape(n, c, h, w)


# --------------------------------------------------------------------------- #
# Pure-JAX reference (mirrors the PyTorch scSELayer forward, NCHW)
# --------------------------------------------------------------------------- #
def scse_reference(u, w_squeeze, w_excite, w_spatial):
    z = jnp.mean(u, axis=(2, 3), keepdims=True)             # (N, C, 1, 1)
    s = jnp.einsum("oc,ncij->noij", w_squeeze, z)            # (N, C//2, 1, 1)
    e = jnp.einsum("oc,ncij->noij", w_excite, s)             # (N, C, 1, 1)
    scale_c = jax.nn.sigmoid(e)
    q = jnp.einsum("oc,nchw->nohw", w_spatial, u)            # (N, 1, H, W)
    scale_s = jax.nn.sigmoid(q)
    return u * scale_c + u * scale_s


if __name__ == "__main__":
    key = jax.random.PRNGKey(0)
    k1, k2, k3, k4 = jax.random.split(key, 4)
    N, C, H, W = 2, 4, 16, 16

    U = jax.random.normal(k1, (N, C, H, W), dtype=jnp.float32)
    # Weight shapes from nn.Conv2d(..., kernel_size=1, bias=False)
    w_squeeze = jax.random.normal(k2, (C // 2, C), dtype=jnp.float32) * 0.5
    w_excite = jax.random.normal(k3, (C, C // 2), dtype=jnp.float32) * 0.5
    w_spatial = jax.random.normal(k4, (1, C), dtype=jnp.float32) * 0.5

    ref = scse_reference(U, w_squeeze, w_excite, w_spatial)

    # Default: fused single-pass path (per-batch slab fits VMEM).
    out_fused = jax.block_until_ready(scse_pallas(U, w_squeeze, w_excite, w_spatial))
    assert out_fused.shape == (N, C, H, W)
    err_f = float(jnp.max(jnp.abs(out_fused - ref)))
    assert jnp.allclose(out_fused, ref, rtol=1e-5, atol=1e-5), f"fused max abs err {err_f}"

    # Also exercise the tiled fallback path.
    out_tiled = jax.block_until_ready(
        scse_pallas(U, w_squeeze, w_excite, w_spatial, force_tiled=True))
    err_t = float(jnp.max(jnp.abs(out_tiled - ref)))
    assert jnp.allclose(out_tiled, ref, rtol=1e-5, atol=1e-5), f"tiled max abs err {err_t}"

    print("KERNEL_OK")
</pallas_src>

<mosaic_0001>
module attributes {stable_mosaic.version = 11 : i64} {
  func.func @_scse_fused_kernel(%arg0: i32, %arg1: memref<1x4x256xf32, #tpu.memory_space<vmem>>, %arg2: memref<2x4xf32, #tpu.memory_space<vmem>>, %arg3: memref<4x2xf32, #tpu.memory_space<vmem>>, %arg4: memref<1x4xf32, #tpu.memory_space<vmem>>, %arg5: memref<1x4x256xf32, #tpu.memory_space<vmem>>) attributes {dimension_semantics = [#tpu.dimension_semantics<parallel>], iteration_bounds = array<i64: 2>, scalar_prefetch = 0 : i64, scratch_operands = 0 : i64, tpu.core_type = #tpu.core_type<tc>, window_params = [{transform_indices = @transform_0, window_bounds = array<i64: 1, 4, 256>}, {pipeline_mode = #tpu.pipeline_mode<synchronous>, transform_indices = @transform_1, window_bounds = array<i64: 2, 4>}, {pipeline_mode = #tpu.pipeline_mode<synchronous>, transform_indices = @transform_2, window_bounds = array<i64: 4, 2>}, {pipeline_mode = #tpu.pipeline_mode<synchronous>, transform_indices = @transform_3, window_bounds = array<i64: 1, 4>}, {transform_indices = @transform_4, window_bounds = array<i64: 1, 4, 256>}]} {
    %c0 = arith.constant 0 : index
    %c0_0 = arith.constant 0 : index
    %c0_1 = arith.constant 0 : index
    %0 = vector.load %arg1[%c0, %c0_0, %c0_1] : memref<1x4x256xf32, #tpu.memory_space<vmem>>, vector<1x4x256xf32>
    %1 = vector.shape_cast %0 : vector<1x4x256xf32> to vector<4x256xf32>
    %cst = arith.constant dense<0.000000e+00> : vector<4xf32>
    %2 = vector.multi_reduction <add>, %1, %cst [1] : vector<4x256xf32> to vector<4xf32>
    %3 = vector.shape_cast %2 : vector<4xf32> to vector<4x1xf32>
    %cst_2 = arith.constant 3.906250e-03 : f32
    %4 = vector.broadcast %cst_2 : f32 to vector<4x1xf32>
    %5 = arith.mulf %3, %4 : vector<4x1xf32>
    %c0_3 = arith.constant 0 : index
    %c0_4 = arith.constant 0 : index
    %6 = vector.load %arg2[%c0_3, %c0_4] : memref<2x4xf32, #tpu.memory_space<vmem>>, vector<2x4xf32>
    %cst_5 = arith.constant dense<0.000000e+00> : vector<2x1xf32>
    %7 = tpu.matmul %6, %5, %cst_5 {dimension_numbers = #tpu.dot_dimension_numbers<[1], [0], [0], [1], [0, 0, 1, 1], [], []>} : vector<2x4xf32>, vector<4x1xf32>, vector<2x1xf32> -> vector<2x1xf32>
    %c0_6 = arith.constant 0 : index
    %c0_7 = arith.constant 0 : index
    %8 = vector.load %arg3[%c0_6, %c0_7] : memref<4x2xf32, #tpu.memory_space<vmem>>, vector<4x2xf32>
    %cst_8 = arith.constant dense<0.000000e+00> : vector<4x1xf32>
    %9 = tpu.matmul %8, %7, %cst_8 {dimension_numbers = #tpu.dot_dimension_numbers<[1], [0], [0], [1], [0, 0, 1, 1], [], []>} : vector<4x2xf32>, vector<2x1xf32>, vector<4x1xf32> -> vector<4x1xf32>
    %10 = arith.negf %9 : vector<4x1xf32>
    %11 = math.exp %10 : vector<4x1xf32>
    %cst_9 = arith.constant 1.000000e+00 : f32
    %12 = vector.broadcast %cst_9 : f32 to vector<4x1xf32>
    %13 = arith.addf %12, %11 : vector<4x1xf32>
    %14 = arith.divf %12, %13 : vector<4x1xf32>
    %c0_10 = arith.constant 0 : index
    %c0_11 = arith.constant 0 : index
    %15 = vector.load %arg4[%c0_10, %c0_11] : memref<1x4xf32, #tpu.memory_space<vmem>>, vector<1x4xf32>
    %cst_12 = arith.constant dense<0.000000e+00> : vector<1x256xf32>
    %16 = tpu.matmul %15, %1, %cst_12 {dimension_numbers = #tpu.dot_dimension_numbers<[1], [0], [0], [1], [0, 0, 1, 1], [], []>} : vector<1x4xf32>, vector<4x256xf32>, vector<1x256xf32> -> vector<1x256xf32>
    %17 = arith.negf %16 : vector<1x256xf32>
    %18 = math.exp %17 : vector<1x256xf32>
    %cst_13 = arith.constant 1.000000e+00 : f32
    %19 = vector.broadcast %cst_13 : f32 to vector<1x256xf32>
    %20 = arith.addf %19, %18 : vector<1x256xf32>
    %21 = arith.divf %19, %20 : vector<1x256xf32>
    %22 = vector.broadcast %14 : vector<4x1xf32> to vector<4x256xf32>
    %23 = vector.broadcast %21 : vector<1x256xf32> to vector<4x256xf32>
    %24 = arith.addf %22, %23 : vector<4x256xf32>
    %25 = arith.mulf %1, %24 : vector<4x256xf32>
    %c0_14 = arith.constant 0 : index
    %c0_15 = arith.constant 0 : index
    %c0_16 = arith.constant 0 : index
    %26 = vector.load %arg5[%c0_14, %c0_15, %c0_16] : memref<1x4x256xf32, #tpu.memory_space<vmem>>, vector<1x4x256xf32>
    %27 = vector.shape_cast %26 : vector<1x4x256xf32> to vector<4x256xf32>
    %28 = vector.shape_cast %25 : vector<4x256xf32> to vector<1x4x256xf32>
    tpu.vector_store %arg5[%c0_14, %c0_15, %c0_16], %28 {strides = array<i32>} : memref<1x4x256xf32, #tpu.memory_space<vmem>>, vector<1x4x256xf32>,
    return
  }
  func.func @transform_0(%arg0: i32) -> (i32, i32, i32) {
    %c0_i32 = arith.constant 0 : i32
    %c0_i32_0 = arith.constant 0 : i32
    %c0_i32_1 = arith.constant 0 : i32
    return %arg0, %c0_i32, %c0_i32_0 : i32, i32, i32
  }
  func.func @transform_1(%arg0: i32) -> (i32, i32) {
    %c0_i32 = arith.constant 0 : i32
    %c0_i32_0 = arith.constant 0 : i32
    %c0_i32_1 = arith.constant 0 : i32
    return %c0_i32, %c0_i32_0 : i32, i32
  }
  func.func @transform_2(%arg0: i32) -> (i32, i32) {
    %c0_i32 = arith.constant 0 : i32
    %c0_i32_0 = arith.constant 0 : i32
    %c0_i32_1 = arith.constant 0 : i32
    return %c0_i32, %c0_i32_0 : i32, i32
  }
  func.func @transform_3(%arg0: i32) -> (i32, i32) {
    %c0_i32 = arith.constant 0 : i32
    %c0_i32_0 = arith.constant 0 : i32
    %c0_i32_1 = arith.constant 0 : i32
    return %c0_i32, %c0_i32_0 : i32, i32
  }
  func.func @transform_4(%arg0: i32) -> (i32, i32, i32) {
    %c0_i32 = arith.constant 0 : i32
    %c0_i32_0 = arith.constant 0 : i32
    %c0_i32_1 = arith.constant 0 : i32
    return %arg0, %c0_i32, %c0_i32_0 : i32, i32, i32
  }
}

</mosaic_0001>

<llo_original>
// kernel: tpu_custom_call.1
$region0: #{tpu_custom_call.1}
  #allocation0 [shape = 'u32[]', space=smem, size = 0x4, offset = 0x4, fixed_abs, tag = 'smem constant byte address 0x4 - core index']
  #allocation1 [shape = 'u32[144,128]{1,0:T(1,128)}', space=vmem, size = 0x12000, scoped, tag = 'internal scratch']
  %s0 = inlined_call_operand.hbm [shape: f32[2,4,256], index: 0, kind: input, shape index: {}]
  %s1 = inlined_call_operand.vmem [shape: f32[2,4], index: 1, kind: input, shape index: {}]
  %s2 = inlined_call_operand.vmem [shape: f32[4,2], index: 2, kind: input, shape index: {}]
  %s3 = inlined_call_operand.vmem [shape: f32[1,4], index: 3, kind: input, shape index: {}]
  %s4 = inlined_call_operand.hbm [shape: f32[2,4,256], index: 4, kind: output, shape index: {}]
  %s5 = sld [smem:[#allocation0]]
  $region53: #{tpu_custom_call.1} parent=0
    _
  %s7 = ssub.s32 1, %s5
  %s8 = scalar_select 0, %s7, %s5
  $region1: #{tpu_custom_call.1} parent=0
    #allocation2 [shape = 'u8[8192]{0}', space=vmem, size = 0x2000, scoped, tag = 'input window, operand 0']
    #allocation3 [shape = 's32[2]{0}', space=sflag, size = 0x8, scoped, tag = 'scoped memory for tpu_custom_call.1']
    #allocation4 [shape = 's32[2]{0}', space=sflag, size = 0x8, scoped, tag = 'scoped memory for tpu_custom_call.1']
    #allocation5 [shape = 'u8[8192]{0}', space=vmem, size = 0x2000, scoped, tag = 'output window, operand 0']
    %9 = vsyncpa [#allocation3], 0
    %s10 = scalar_lea.sflag [#allocation3], 1
    %11 = vsyncpa %s10, 0
    %12 = vsyncpa [#allocation4], 0
    %s13 = scalar_lea.sflag [#allocation4], 1
    %14 = vsyncpa %s13, 0
    loop: start=0, step=1, limit=4
    $region2: #{tpu_custom_call.1} parent=1 // loop_pre_header
      _
    $region3: #{tpu_custom_call.1} parent=1 // loop_header
      %s16 = sphi 0, %s20
      %p17 = scmp.ge.s32.totalorder %s16, 4
      %s26 = sphi 0, %s28
      %s29 = sphi 0, %s26
      %s30 = sphi 0, %s29
      %s46 = sphi 0, %s30
      %s50 = sphi 0, %s50
      %s52 = sphi 0, %s50
      %s53 = sphi 0, %s52
      %s67 = sphi 0, %s53
      %s71 = sphi 0, %s71
      %s73 = sphi 0, %s71
      %s74 = sphi 0, %s73
      %s88 = sphi 0, %s74
      %s92 = sphi 0, %s92
      %s94 = sphi 0, %s92
      %s95 = sphi 0, %s94
      %s109 = sphi 0, %s95
      %s115 = sphi 0, %s117
      %s118 = sphi 0, %s115
      %s119 = sphi 0, %s118
      %s135 = sphi 0, %s119
    $region4: #{tpu_custom_call.1} parent=1 // loop_header_branch
      %19 = sbr.rel (%p17) target = $region8
    $region5: #{tpu_custom_call.1} parent=1 // loop_body
      %s21 = ssub.s32 %s16, 1
      %s22 = ssub.s32 %s16, 2
      %s23 = sadd.s32 %s16, 1
      %s24 = ssub.s32 %s16, %s23
      %p25 = scmp.eq.s32.totalorder %s24, 0
      %s27 = sadd.s32 %s26, 1
      %s28 = scalar_select %p25, %s26, %s27
      %p31 = pneg %p25
      %p32 = scmp.eq.s32.totalorder %s16, 1
      %p33 = por %p31, %p32
      %p34 = scmp.ne.s32.totalorder %s26, %s29
      %p35 = scmp.eq.s32.totalorder %s16, 0
      %p36 = por %p34, %p35
      %p37 = scmp.ne.s32.totalorder %s26, %s29
      %p38 = scmp.eq.s32.totalorder %s21, 1
      %p39 = por %p37, %p38
      %p40 = scmp.ne.s32.totalorder %s29, %s30
      %p41 = scmp.eq.s32.totalorder %s21, 0
      %p42 = por %p40, %p41
      %p43 = scmp.ne.s32.totalorder %s29, %s30
      %p44 = scmp.eq.s32.totalorder %s22, 1
      %p45 = por %p43, %p44
      %p47 = scmp.ne.s32.totalorder %s30, %s46
      %p48 = scmp.eq.s32.totalorder %s22, 0
      %p49 = por %p47, %p48
      %s51 = sadd.s32 %s50, 1
      %p54 = scmp.eq.s32.totalorder %s16, 1
      %p55 = scmp.ne.s32.totalorder %s50, %s52
      %p56 = scmp.eq.s32.totalorder %s16, 0
      %p57 = por %p55, %p56
      %p58 = scmp.ne.s32.totalorder %s50, %s52
      %p59 = scmp.eq.s32.totalorder %s21, 1
      %p60 = por %p58, %p59
      %p61 = scmp.ne.s32.totalorder %s52, %s53
      %p62 = scmp.eq.s32.totalorder %s21, 0
      %p63 = por %p61, %p62
      %p64 = scmp.ne.s32.totalorder %s52, %s53
      %p65 = scmp.eq.s32.totalorder %s22, 1
      %p66 = por %p64, %p65
      %p68 = scmp.ne.s32.totalorder %s53, %s67
      %p69 = scmp.eq.s32.totalorder %s22, 0
      %p70 = por %p68, %p69
      %s72 = sadd.s32 %s71, 1
      %p75 = scmp.eq.s32.totalorder %s16, 1
      %p76 = scmp.ne.s32.totalorder %s71, %s73
      %p77 = scmp.eq.s32.totalorder %s16, 0
      %p78 = por %p76, %p77
      %p79 = scmp.ne.s32.totalorder %s71, %s73
      %p80 = scmp.eq.s32.totalorder %s21, 1
      %p81 = por %p79, %p80
      %p82 = scmp.ne.s32.totalorder %s73, %s74
      %p83 = scmp.eq.s32.totalorder %s21, 0
      %p84 = por %p82, %p83
      %p85 = scmp.ne.s32.totalorder %s73, %s74
      %p86 = scmp.eq.s32.totalorder %s22, 1
      %p87 = por %p85, %p86
      %p89 = scmp.ne.s32.totalorder %s74, %s88
      %p90 = scmp.eq.s32.totalorder %s22, 0
      %p91 = por %p89, %p90
      %s93 = sadd.s32 %s92, 1
      %p96 = scmp.eq.s32.totalorder %s16, 1
      %p97 = scmp.ne.s32.totalorder %s92, %s94
      %p98 = scmp.eq.s32.totalorder %s16, 0
      %p99 = por %p97, %p98
      %p100 = scmp.ne.s32.totalorder %s92, %s94
      %p101 = scmp.eq.s32.totalorder %s21, 1
      %p102 = por %p100, %p101
      %p103 = scmp.ne.s32.totalorder %s94, %s95
      %p104 = scmp.eq.s32.totalorder %s21, 0
      %p105 = por %p103, %p104
      %p106 = scmp.ne.s32.totalorder %s94, %s95
      %p107 = scmp.eq.s32.totalorder %s22, 1
      %p108 = por %p106, %p107
      %p110 = scmp.ne.s32.totalorder %s95, %s109
      %p111 = scmp.eq.s32.totalorder %s22, 0
      %p112 = por %p110, %p111
      %s113 = ssub.s32 %s16, %s23
      %p114 = scmp.eq.s32.totalorder %s113, 0
      %s116 = sadd.s32 %s115, 1
      %s117 = scalar_select %p114, %s115, %s116
      %p120 = pneg %p114
      %p121 = scmp.eq.s32.totalorder %s16, 1
      %p122 = por %p120, %p121
      %p123 = scmp.ne.s32.totalorder %s115, %s118
      %p124 = scmp.eq.s32.totalorder %s16, 0
      %p125 = por %p123, %p124
      %p126 = scmp.ne.s32.totalorder %s115, %s118
      %p127 = scmp.eq.s32.totalorder %s21, 1
      %p128 = por %p126, %p127
      %p129 = scmp.ne.s32.totalorder %s118, %s119
      %p130 = scmp.eq.s32.totalorder %s21, 0
      %p131 = por %p129, %p130
      %p132 = scmp.ne.s32.totalorder %s118, %s119
      %p133 = scmp.eq.s32.totalorder %s22, 1
      %p134 = por %p132, %p133
      %p136 = scmp.ne.s32.totalorder %s119, %s135
      %p137 = scmp.eq.s32.totalorder %s22, 0
      %p138 = por %p136, %p137
      %p139 = scmp.le.s32.totalorder 1, %s16
      %p140 = scmp.lt.s32.totalorder %s16, 3
      %p141 = pnand %p139, %p140
      %p142 = pneg %p141
      // Predicated region
      $region9: #{tpu_custom_call.1} parent=5 // pred_check
        _
      $region10: #{tpu_custom_call.1} parent=5 // pred_check_branch
        %144 = sbr.rel (%p141) target = $region12
      $region11: #{tpu_custom_call.1} parent=5 // pred_region
        %s145 = ssub.s32 %s16, 1
        // Predicated region
        $region13: #{tpu_custom_call.1} parent=11 // pred_check
          %p146 = pneg %p63
        $region14: #{tpu_custom_call.1} parent=11 // pred_check_branch
          %148 = sbr.rel (%p146) target = $region16
        $region15: #{tpu_custom_call.1} parent=11 // pred_region
          _
        $region16: #{tpu_custom_call.1} parent=11 // pred_fallthru
          _
        // Predicated region
        $region17: #{tpu_custom_call.1} parent=11 // pred_check
          %p149 = pneg %p84
        $region18: #{tpu_custom_call.1} parent=11 // pred_check_branch
          %151 = sbr.rel (%p149) target = $region20
        $region19: #{tpu_custom_call.1} parent=11 // pred_region
          _
        $region20: #{tpu_custom_call.1} parent=11 // pred_fallthru
          _
        // Predicated region
        $region21: #{tpu_custom_call.1} parent=11 // pred_check
          %p152 = pneg %p105
        $region22: #{tpu_custom_call.1} parent=11 // pred_check_branch
          %154 = sbr.rel (%p152) target = $region24
        $region23: #{tpu_custom_call.1} parent=11 // pred_region
          _
        $region24: #{tpu_custom_call.1} parent=11 // pred_fallthru
          _
      $region12: #{tpu_custom_call.1} parent=5 // pred_fallthru
        _
      %p155 = scmp.lt.s32.totalorder %s16, 2
      // Predicated region
      $region25: #{tpu_custom_call.1} parent=5 // pred_check
        %p156 = pneg %p155
      $region26: #{tpu_custom_call.1} parent=5 // pred_check_branch
        %158 = sbr.rel (%p156) target = $region28
      $region27: #{tpu_custom_call.1} parent=5 // pred_region
        // Predicated region
        $region29: #{tpu_custom_call.1} parent=27 // pred_check
          %p159 = pneg %p36
        $region30: #{tpu_custom_call.1} parent=27 // pred_check_branch
          %161 = sbr.rel (%p159) target = $region32
        $region31: #{tpu_custom_call.1} parent=27 // pred_region
          %s162 = sand.u32 %s26, 1
          %s163 = scalar_lea.sflag [#allocation3], %s162
          %s164 = sand.u32 %s26, 1
          %s165 = smul.addr %s164, 8
          %s166 = scalar_lea.vmem [#allocation2], %s165
          %s168 = ssub.s32 128, 128
          %169 = vsyncadd %s163, %s168
          %s170 = smul.addr %s16, 2
          %s171 = smul.addr %s170, 64
          %s172 = scalar_lea.hbm %s0, %s171
          %s174 = sshll.u32 %s166, 4
          %s175 = int_to_ptr.vmem [resolvable:$true] %s174
          %177 = dma.hbm_to_vmem [thread:$0]  %s172, 128, %s175, %s163
        $region32: #{tpu_custom_call.1} parent=27 // pred_fallthru
          _
      $region28: #{tpu_custom_call.1} parent=5 // pred_fallthru
        _
      %p178 = scmp.le.s32.totalorder 1, %s16
      %p179 = scmp.lt.s32.totalorder %s16, 3
      %p180 = pnand %p178, %p179
      %p181 = pneg %p180
      // Predicated region
      $region33: #{tpu_custom_call.1} parent=5 // pred_check
        _
      $region34: #{tpu_custom_call.1} parent=5 // pred_check_branch
        %183 = sbr.rel (%p180) target = $region36
      $region35: #{tpu_custom_call.1} parent=5 // pred_region
        %s184 = ssub.s32 %s16, 1
        %s185 = sand.u32 %s29, 1
        %s186 = scalar_lea.sflag [#allocation3], %s185
        %s187 = sand.u32 %s29, 1
        %s188 = smul.addr %s187, 8
        %s189 = scalar_lea.vmem [#allocation2], %s188
        // Predicated region
        $region37: #{tpu_custom_call.1} parent=35 // pred_check
          %p190 = pneg %p42
        $region38: #{tpu_custom_call.1} parent=35 // pred_check_branch
          %192 = sbr.rel (%p190) target = $region40
        $region39: #{tpu_custom_call.1} parent=35 // pred_region
          %193 = dma.done %s186, 128
        $region40: #{tpu_custom_call.1} parent=35 // pred_fallthru
          _
        %s194 = sand.u32 %s29, 1
        %s195 = scalar_lea.sflag [#allocation3], %s194
        %s196 = sand.u32 %s29, 1
        %s197 = smul.addr %s196, 8
        %s198 = scalar_lea.vmem [#allocation2], %s197
        %p199 = pneg %p42
        %p200 = pneg %p39
        %p201 = pneg %p63
        %p202 = pneg %p60
        %p203 = pneg %p84
        %p204 = pneg %p81
        %p205 = pneg %p105
        %p206 = pneg %p102
        %p207 = pneg %p131
        %p208 = pneg %p128
        %s209 = sand.u32 %s118, 1
        %s210 = scalar_lea.sflag [#allocation4], %s209
        %s211 = sand.u32 %s118, 1
        %s212 = smul.addr %s211, 8
        %s213 = scalar_lea.vmem [#allocation5], %s212
        %v214 = vld [vmem:[%s189] sm:$0xff]
        %v216 = vcombine.high %v214, %v214
        %vm218 = vcmask 1043456
        %v219 = vsel %vm218, %v214, 0.0
        %v220 = vsel %vm218, %v216, 0.0
        %v221 = vadd.f32 %v219, %v220
        %222 = vadd.xlane.f32.xlu0 %v221
        %v223 = vpop.xlane.xlu0 %222
        %v224 = vmul.f32 %v223, 0.00390625
        %v225 = vld [vmem:[%s1] sm:$0x3]
        %vm226 = vcmask 31744
        %v228 = vsel %vm226, %v225, 0
        %v231 = vsel %vm218, %v224, 0
        %233 = vmatprep.subr.mxu0 0.0
        %234 = vmatpush1.msra.mxu0 %v231
        %235 = vmatprep.subr.mxu0 0.0
        %236 = vmatpush1.msra.mxu0 0.0
        %237 = vmatprep.subr.mxu0 0.0
        %238 = vmatpush1.msra.mxu0 0.0
        %239 = vmatprep.subr.mxu0 0.0
        %240 = vmatpush1.msra.mxu0 0.0
        %241 = vmatprep.subr.mxu0 0.0
        %242 = vmatpush1.msra.mxu0 0.0
        %243 = vmatprep.subr.mxu0 0.0
        %244 = vmatpush1.msra.mxu0 0.0
        %245 = vmatprep.subr.mxu0 0.0
        %246 = vmatpush1.msra.mxu0 0.0
        %247 = vmatprep.subr.mxu0 0.0
        %248 = vmatpush1.msra.mxu0 0.0
        %249 = vmatprep.subr.mxu0 0.0
        %250 = vmatpush1.msra.mxu0 0.0
        %251 = vmatprep.subr.mxu0 0.0
        %252 = vmatpush1.msra.mxu0 0.0
        %253 = vmatprep.subr.mxu0 0.0
        %254 = vmatpush1.msra.mxu0 0.0
        %255 = vmatprep.subr.mxu0 0.0
        %256 = vmatpush1.msra.mxu0 0.0
        %257 = vmatprep.subr.mxu0 0.0
        %258 = vmatpush1.msra.mxu0 0.0
        %259 = vmatprep.subr.mxu0 0.0
        %260 = vmatpush1.msra.mxu0 0.0
        %261 = vmatprep.subr.mxu0 0.0
        %262 = vmatpush1.msra.mxu0 0.0
        %263 = vmatprep.subr.mxu0 0.0
        %264 = vmatpush1.msra.mxu0 0.0
        %265 = vmatprep.subr.mxu0 0.0
        %266 = vmatpush1.msra.mxu0 0.0
        %267 = vmatprep.subr.mxu0 0.0
        %268 = vmatpush1.msra.mxu0 0.0
        %269 = vmatprep.subr.mxu0 0.0
        %270 = vmatpush1.msra.mxu0 0.0
        %271 = vmatprep.subr.mxu0 0.0
        %272 = vmatpush1.msra.mxu0 0.0
        %273 = vmatprep.subr.mxu0 0.0
        %274 = vmatpush1.msra.mxu0 0.0
        %275 = vmatprep.subr.mxu0 0.0
        %276 = vmatpush1.msra.mxu0 0.0
        %277 = vmatprep.subr.mxu0 0.0
        %278 = vmatpush1.msra.mxu0 0.0
        %279 = vmatprep.subr.mxu0 0.0
        %280 = vmatpush1.msra.mxu0 0.0
        %281 = vmatprep.subr.mxu0 0.0
        %282 = vmatpush1.msra.mxu0 0.0
        %283 = vmatprep.subr.mxu0 0.0
        %284 = vmatpush1.msra.mxu0 0.0
        %285 = vmatprep.subr.mxu0 0.0
        %286 = vmatpush1.msra.mxu0 0.0
        %287 = vmatprep.subr.mxu0 0.0
        %288 = vmatpush1.msra.mxu0 0.0
        %289 = vmatprep.subr.mxu0 0.0
        %290 = vmatpush1.msra.mxu0 0.0
        %291 = vmatprep.subr.mxu0 0.0
        %292 = vmatpush1.msra.mxu0 0.0
        %293 = vmatprep.subr.mxu0 0.0
        %294 = vmatpush1.msra.mxu0 0.0
        %295 = vmatprep.subr.mxu0 0.0
        %296 = vmatpush1.msra.mxu0 0.0
        %297 = vmatprep.mubr.f32.mxu0 0.0
        %298 = vmatmul.mubr.f32.gmra.mrb[0].mxu0 %v228
        %v299 = vpop.f32.mrb[0].mxu0
        %v300 = vadd.f32 0.0, %v299
        %v301 = vpop.f32.mrb[0].mxu0
        %302 = vdwg.mxu0
        %v303 = vld [vmem:[%s2] sm:$0xf]
        %vm304 = vcmask 15360
        %v306 = vsel %vm304, %v303, 0
        %vm308 = vcmask 1041408
        %v310 = vsel %vm308, %v300, 0
        %312 = vmatprep.subr.mxu0 0.0
        %313 = vmatpush1.msra.mxu0 %v310
        %314 = vmatprep.subr.mxu0 0.0
        %315 = vmatpush1.msra.mxu0 0.0
        %316 = vmatprep.subr.mxu0 0.0
        %317 = vmatpush1.msra.mxu0 0.0
        %318 = vmatprep.subr.mxu0 0.0
        %319 = vmatpush1.msra.mxu0 0.0
        %320 = vmatprep.subr.mxu0 0.0
        %321 = vmatpush1.msra.mxu0 0.0
        %322 = vmatprep.subr.mxu0 0.0
        %323 = vmatpush1.msra.mxu0 0.0
        %324 = vmatprep.subr.mxu0 0.0
        %325 = vmatpush1.msra.mxu0 0.0
        %326 = vmatprep.subr.mxu0 0.0
        %327 = vmatpush1.msra.mxu0 0.0
        %328 = vmatprep.subr.mxu0 0.0
        %329 = vmatpush1.msra.mxu0 0.0
        %330 = vmatprep.subr.mxu0 0.0
        %331 = vmatpush1.msra.mxu0 0.0
        %332 = vmatprep.subr.mxu0 0.0
        %333 = vmatpush1.msra.mxu0 0.0
        %334 = vmatprep.subr.mxu0 0.0
        %335 = vmatpush1.msra.mxu0 0.0
        %336 = vmatprep.subr.mxu0 0.0
        %337 = vmatpush1.msra.mxu0 0.0
        %338 = vmatprep.subr.mxu0 0.0
        %339 = vmatpush1.msra.mxu0 0.0
        %340 = vmatprep.subr.mxu0 0.0
        %341 = vmatpush1.msra.mxu0 0.0
        %342 = vmatprep.subr.mxu0 0.0
        %343 = vmatpush1.msra.mxu0 0.0
        %344 = vmatprep.subr.mxu0 0.0
        %345 = vmatpush1.msra.mxu0 0.0
        %346 = vmatprep.subr.mxu0 0.0
        %347 = vmatpush1.msra.mxu0 0.0
        %348 = vmatprep.subr.mxu0 0.0
        %349 = vmatpush1.msra.mxu0 0.0
        %350 = vmatprep.subr.mxu0 0.0
        %351 = vmatpush1.msra.mxu0 0.0
        %352 = vmatprep.subr.mxu0 0.0
        %353 = vmatpush1.msra.mxu0 0.0
        %354 = vmatprep.subr.mxu0 0.0
        %355 = vmatpush1.msra.mxu0 0.0
        %356 = vmatprep.subr.mxu0 0.0
        %357 = vmatpush1.msra.mxu0 0.0
        %358 = vmatprep.subr.mxu0 0.0
        %359 = vmatpush1.msra.mxu0 0.0
        %360 = vmatprep.subr.mxu0 0.0
        %361 = vmatpush1.msra.mxu0 0.0
        %362 = vmatprep.subr.mxu0 0.0
        %363 = vmatpush1.msra.mxu0 0.0
        %364 = vmatprep.subr.mxu0 0.0
        %365 = vmatpush1.msra.mxu0 0.0
        %366 = vmatprep.subr.mxu0 0.0
        %367 = vmatpush1.msra.mxu0 0.0
        %368 = vmatprep.subr.mxu0 0.0
        %369 = vmatpush1.msra.mxu0 0.0
        %370 = vmatprep.subr.mxu0 0.0
        %371 = vmatpush1.msra.mxu0 0.0
        %372 = vmatprep.subr.mxu0 0.0
        %373 = vmatpush1.msra.mxu0 0.0
        %374 = vmatprep.subr.mxu0 0.0
        %375 = vmatpush1.msra.mxu0 0.0
        %376 = vmatprep.mubr.f32.mxu0 0.0
        %377 = vmatmul.mubr.f32.gmra.mrb[0].mxu0 %v306
        %v378 = vpop.f32.mrb[0].mxu0
        %v379 = vadd.f32 0.0, %v378
        %v380 = vpop.f32.mrb[0].mxu0
        %381 = vdwg.mxu0
        %v382 = vxor.u32 %v379, 2147483648
        %v383 = vmul.f32 %v382, 1.442695
        %v384 = vpow.pop %v383
        %v385 = vadd.f32 %v384, 1.0
        %v386 = vrcp.pop %v385
        %v387 = vmul.f32 1.0, %v386
        %v388 = vld [vmem:[%s3] sm:$0x1]
        %v390 = vsel %vm226, %v388, 0
        %v392 = vsel %vm218, %v214, 0
        %v394 = vsel %vm218, %v216, 0
        %396 = vmatprep.subr.mxu0 %v394
        %397 = vmatpush1.msra.mxu0 %v392
        %398 = vmatprep.subr.mxu0 0.0
        %399 = vmatpush1.msra.mxu0 0.0
        %400 = vmatprep.subr.mxu0 0.0
        %401 = vmatpush1.msra.mxu0 0.0
        %402 = vmatprep.subr.mxu0 0.0
        %403 = vmatpush1.msra.mxu0 0.0
        %404 = vmatprep.subr.mxu0 0.0
        %405 = vmatpush1.msra.mxu0 0.0
        %406 = vmatprep.subr.mxu0 0.0
        %407 = vmatpush1.msra.mxu0 0.0
        %408 = vmatprep.subr.mxu0 0.0
        %409 = vmatpush1.msra.mxu0 0.0
        %410 = vmatprep.subr.mxu0 0.0
        %411 = vmatpush1.msra.mxu0 0.0
        %412 = vmatprep.subr.mxu0 0.0
        %413 = vmatpush1.msra.mxu0 0.0
        %414 = vmatprep.subr.mxu0 0.0
        %415 = vmatpush1.msra.mxu0 0.0
        %416 = vmatprep.subr.mxu0 0.0
        %417 = vmatpush1.msra.mxu0 0.0
        %418 = vmatprep.subr.mxu0 0.0
        %419 = vmatpush1.msra.mxu0 0.0
        %420 = vmatprep.subr.mxu0 0.0
        %421 = vmatpush1.msra.mxu0 0.0
        %422 = vmatprep.subr.mxu0 0.0
        %423 = vmatpush1.msra.mxu0 0.0
        %424 = vmatprep.subr.mxu0 0.0
        %425 = vmatpush1.msra.mxu0 0.0
        %426 = vmatprep.subr.mxu0 0.0
        %427 = vmatpush1.msra.mxu0 0.0
        %428 = vmatprep.subr.mxu0 0.0
        %429 = vmatpush1.msra.mxu0 0.0
        %430 = vmatprep.subr.mxu0 0.0
        %431 = vmatpush1.msra.mxu0 0.0
        %432 = vmatprep.subr.mxu0 0.0
        %433 = vmatpush1.msra.mxu0 0.0
        %434 = vmatprep.subr.mxu0 0.0
        %435 = vmatpush1.msra.mxu0 0.0
        %436 = vmatprep.subr.mxu0 0.0
        %437 = vmatpush1.msra.mxu0 0.0
        %438 = vmatprep.subr.mxu0 0.0
        %439 = vmatpush1.msra.mxu0 0.0
        %440 = vmatprep.subr.mxu0 0.0
        %441 = vmatpush1.msra.mxu0 0.0
        %442 = vmatprep.subr.mxu0 0.0
        %443 = vmatpush1.msra.mxu0 0.0
        %444 = vmatprep.subr.mxu0 0.0
        %445 = vmatpush1.msra.mxu0 0.0
        %446 = vmatprep.subr.mxu0 0.0
        %447 = vmatpush1.msra.mxu0 0.0
        %448 = vmatprep.subr.mxu0 0.0
        %449 = vmatpush1.msra.mxu0 0.0
        %450 = vmatprep.subr.mxu0 0.0
        %451 = vmatpush1.msra.mxu0 0.0
        %452 = vmatprep.subr.mxu0 0.0
        %453 = vmatpush1.msra.mxu0 0.0
        %454 = vmatprep.subr.mxu0 0.0
        %455 = vmatpush1.msra.mxu0 0.0
        %456 = vmatprep.subr.mxu0 0.0
        %457 = vmatpush1.msra.mxu0 0.0
        %458 = vmatprep.subr.mxu0 0.0
        %459 = vmatpush1.msra.mxu0 0.0
        %460 = vmatprep.mubr.f32.mxu0 0.0
        %461 = vmatmul.mubr.f32.gmra.mrb[0].mxu0 %v390
        %v462 = vpop.f32.mrb[0].mxu0
        %v463 = vadd.f32 0.0, %v462
        %v464 = vpop.f32.mrb[0].mxu0
        %v465 = vadd.f32 0.0, %v464
        %466 = vdwg.mxu0
        %v467 = vxor.u32 %v463, 2147483648
        %v468 = vxor.u32 %v465, 2147483648
        %v469 = vmul.f32 %v467, 1.442695
        %v470 = vpow.pop %v469
        %v471 = vmul.f32 %v468, 1.442695
        %v472 = vpow.pop %v471
        %v473 = vadd.f32 %v470, 1.0
        %v474 = vadd.f32 %v472, 1.0
        %v475 = vrcp.pop %v473
        %v476 = vmul.f32 1.0, %v475
        %v477 = vrcp.pop %v474
        %v478 = vmul.f32 1.0, %v477
        %480 = vset.pattern.permute.xlu0 0
        %481 = vperm.xlu0 %480, %v387
        %v482 = vpop.permute.xlu0 %481
        %v484 = vlaneseq
        %v485 = vshrl.u32 %v484, 7
        %v486 = vsub.s32 0, %v485
        %v487 = vrot.slane %v476, %v486
        %v488 = vlaneseq
        %v489 = vshrl.u32 %v488, 7
        %v490 = vsub.s32 0, %v489
        %v491 = vrot.slane %v478, %v490
        %v492 = vadd.f32 %v482, %v487
        %v493 = vadd.f32 %v482, %v491
        %v496 = vcombine.low %v492, %v493
        %v498 = vmul.f32 %v214, %v496
        %499 = vst [vmem:[%s213] sm:$0xff] %v498
        %s500 = sand.u32 %s118, 1
        %s501 = scalar_lea.sflag [#allocation4], %s500
        %s502 = sand.u32 %s118, 1
        %s503 = smul.addr %s502, 8
        %s504 = scalar_lea.vmem [#allocation5], %s503
        // Predicated region
        $region41: #{tpu_custom_call.1} parent=35 // pred_check
          %p505 = pneg %p128
        $region42: #{tpu_custom_call.1} parent=35 // pred_check_branch
          %507 = sbr.rel (%p505) target = $region44
        $region43: #{tpu_custom_call.1} parent=35 // pred_region
          %s509 = ssub.s32 128, 128
          %510 = vsyncadd %s501, %s509
          %s511 = smul.addr %s21, 2
          %s512 = smul.addr %s511, 64
          %s513 = scalar_lea.hbm %s4, %s512
          %s515 = sshll.u32 %s504, 4
          %s516 = int_to_ptr.vmem [resolvable:$true] %s515
          %518 = dma.vmem_to_hbm [thread:$0]  %s516, 128, %s513, %s501
        $region44: #{tpu_custom_call.1} parent=35 // pred_fallthru
          _
      $region36: #{tpu_custom_call.1} parent=5 // pred_fallthru
        _
      %p519 = scmp.le.s32.totalorder 2, %s16
      // Predicated region
      $region45: #{tpu_custom_call.1} parent=5 // pred_check
        %p520 = pneg %p519
      $region46: #{tpu_custom_call.1} parent=5 // pred_check_branch
        %522 = sbr.rel (%p520) target = $region48
      $region47: #{tpu_custom_call.1} parent=5 // pred_region
        %s523 = ssub.s32 %s16, 2
        // Predicated region
        $region49: #{tpu_custom_call.1} parent=47 // pred_check
          %p524 = pneg %p134
        $region50: #{tpu_custom_call.1} parent=47 // pred_check_branch
          %526 = sbr.rel (%p524) target = $region52
        $region51: #{tpu_custom_call.1} parent=47 // pred_region
          %s527 = sand.u32 %s119, 1
          %s528 = scalar_lea.sflag [#allocation4], %s527
          %s529 = sand.u32 %s119, 1
          %s530 = smul.addr %s529, 8
          %s531 = scalar_lea.vmem [#allocation5], %s530
          %532 = dma.done %s528, 128
        $region52: #{tpu_custom_call.1} parent=47 // pred_fallthru
          _
      $region48: #{tpu_custom_call.1} parent=5 // pred_fallthru
        _
    $region6: #{tpu_custom_call.1} parent=1 // loop_footer
      %s20 = sadd.s32 1, %s16
    $region7: #{tpu_custom_call.1} parent=1 // loop_footer_branch
      %15 = sbr.rel target = $region3
    $region8: #{tpu_custom_call.1} parent=1 // loop_exit
      _
    %533 = vsyncpa [#allocation3], 1
    %s534 = scalar_lea.sflag [#allocation3], 1
    %535 = vsyncpa %s534, 1
    %536 = vsyncpa [#allocation4], 1
    %s537 = scalar_lea.sflag [#allocation4], 1
    %538 = vsyncpa %s537, 1

</llo_original>
